<compile_context>
chip_gen: v7x
topology: tpu7x:2x2x1
jax: 0.10.0
libtpu: 0.0.40
codegen_flags: <defaults>
</compile_context>

<pallas_src>
import jax
import jax.numpy as jnp
from jax import lax
from jax.experimental import pallas as pl
from jax.experimental.pallas import tpu as pltpu


def _round_up(x: int, m: int) -> int:
    return ((x + m - 1) // m) * m


def _cdiv(a: int, b: int) -> int:
    return -(-a // b)


# VMEM budget for double-buffered input/output blocks.  Conservative so it is
# valid on v7x (64 MiB physical VMEM) as well as v5e/v6e (128 MiB).
_VMEM_BLOCK_BUDGET = 40 * 1024 * 1024
_VMEM_LIMIT_BYTES = 48 * 1024 * 1024
_MAX_TILE_LANES = 65536  # 64K lanes * (4N+4C1) bytes is already multi-MB / step


def _choose_tiling(hw: int, n: int, c1: int):
    """Pick a lane-dense (multiple-of-128) HW tile from the VMEM budget."""
    lanes_pad = _round_up(max(hw, 1), 128)
    # Per-lane bytes per grid step, double-buffered: f32 masks in + f32 out.
    bytes_per_lane = 2 * (4 * n + 4 * c1)
    budget_tile = max(128, (_VMEM_BLOCK_BUDGET // bytes_per_lane) // 128 * 128)
    tile_cap = min(budget_tile, _MAX_TILE_LANES)

    if lanes_pad <= tile_cap:
        tile = lanes_pad
        # Prefer >= 2 grid points (keeps both v7x TensorCores busy) when the
        # full extent splits evenly without introducing padding.
        if tile >= 256 and (tile // 128) % 2 == 0:
            tile //= 2
        hw_pad = lanes_pad
    else:
        n128 = lanes_pad // 128
        cap128 = tile_cap // 128
        n_tiles = _cdiv(n128, cap128)
        tile = _cdiv(n128, n_tiles) * 128
        hw_pad = tile * n_tiles

    n_tiles = hw_pad // tile
    return tile, hw_pad, n_tiles


def _seg_mask_kernel(one_hot_ref, masks_ref, out_ref):
    """One lane-dense HW tile of the (C+1, HW) segmentation tensor.

    one_hot_ref: (C+1, N) bf16 -- row 0 = foreground indicator (1 <= label <= C),
                 rows 1..C = per-class indicators.
    masks_ref  : (N, TILE_HW) f32 (binary).
    out_ref    : (C+1, TILE_HW) f32.
    """
    # Binary masks are exact in bf16; the cast is a VPU pass hidden under DMA.
    m = masks_ref[...].astype(jnp.bfloat16)
    res = jnp.dot(one_hot_ref[...], m,
                  preferred_element_type=jnp.float32)        # (C+1, TILE_HW)
    # Row 0 of `res` is the foreground sum; blend in the background channel and
    # store the whole tile exactly once (no second masked store of row 0).
    bg = 1.0 - jnp.minimum(res[0:1, :], 1.0)                 # (1, TILE_HW)
    row = lax.broadcasted_iota(jnp.int32, res.shape, 0)
    out_ref[...] = jnp.where(row == 0, bg, res)


def build_segmentation_tensor(masks, labels, num_classes, height, width):
    """masks: (N, H, W) float/bool binary; labels: (N,) int -> (C+1, H, W) f32."""
    C1 = num_classes + 1
    HW = height * width
    N = masks.shape[0]

    if N == 0:
        # No objects: everything is background.
        seg = jnp.zeros((C1, height, width), dtype=jnp.float32)
        return seg.at[0].set(1.0)

    tile, hw_pad, n_tiles = _choose_tiling(HW, N, C1)

    # Keep masks in f32 for the kernel input (no wrapper-side dtype round-trip;
    # bf16 cast happens in-kernel).  reshape of a contiguous array is free.
    masks_flat = masks.reshape(N, HW)
    if masks_flat.dtype != jnp.float32:
        masks_flat = masks_flat.astype(jnp.float32)
    if hw_pad != HW:
        masks_flat = jnp.pad(masks_flat, ((0, 0), (0, hw_pad - HW)))

    # Tiny (C+1, N) one-hot, built once (not per HW tile).
    # NOTE: labels outside [1, C] contribute to no foreground channel (silently
    # dropped), matching the reference scatter + background overwrite semantics.
    labels_i = labels.astype(jnp.int32)
    classes = jnp.arange(1, num_classes + 1, dtype=jnp.int32)          # (C,)
    class_rows = (labels_i[None, :] == classes[:, None])               # (C, N)
    fg_row = ((labels_i >= 1) & (labels_i <= num_classes))[None, :]    # (1, N)
    one_hot = jnp.concatenate([fg_row, class_rows], axis=0).astype(jnp.bfloat16)

    cost = pl.CostEstimate(
        flops=2 * C1 * N * hw_pad,
        transcendentals=0,
        bytes_accessed=N * hw_pad * 4 + C1 * hw_pad * 4 + C1 * N * 2,
    )

    out = pl.pallas_call(
        _seg_mask_kernel,
        out_shape=jax.ShapeDtypeStruct((C1, hw_pad), jnp.float32),
        grid=(n_tiles,),
        in_specs=[
            pl.BlockSpec((C1, N), lambda j: (0, 0)),       # tiny, reused each tile
            pl.BlockSpec((N, tile), lambda j: (0, j)),     # lane-dense mask tile
        ],
        out_specs=pl.BlockSpec((C1, tile), lambda j: (0, j)),
        compiler_params=pltpu.CompilerParams(
            dimension_semantics=("parallel",),             # HW tiles independent
            vmem_limit_bytes=_VMEM_LIMIT_BYTES,
        ),
        cost_estimate=cost,
    )(one_hot, masks_flat)

    if hw_pad != HW:
        out = out[:, :HW]
    return out.reshape(C1, height, width)


class SegmentationMaskTensorWithBackground:
    """JAX/Pallas equivalent of the PyTorch transform (no learned parameters)."""

    # TODO(synk): for per-image data pipelines, batch several images into one
    # pallas_call (leading parallel grid axis) to amortize call/pipeline warmup.

    def __init__(self, num_classes):
        self.num_classes = num_classes

    def __call__(self, image, target):
        height, width = image.shape[-2], image.shape[-1]
        seg = build_segmentation_tensor(
            target["masks"], target["labels"], self.num_classes, height, width
        )
        target = dict(target)
        target["segmentation_mask"] = seg
        target.pop("masks", None)
        return image, target


def _reference(masks, labels, num_classes, height, width):
    seg = jnp.zeros((num_classes + 1, height, width), dtype=jnp.float32)
    for i in range(labels.shape[0]):
        seg = seg.at[labels[i]].add(masks[i].astype(jnp.float32))
    bg = 1.0 - jnp.minimum(seg[1:].sum(axis=0), 1.0)
    return seg.at[0].set(bg)


if __name__ == "__main__":
    num_classes = 4
    N, H, W = 8, 16, 16

    key = jax.random.PRNGKey(0)
    k_img, k_masks, k_labels = jax.random.split(key, 3)

    image = jax.random.normal(k_img, (3, H, W), dtype=jnp.float32)
    masks = (jax.random.uniform(k_masks, (N, H, W)) < 0.3).astype(jnp.float32)
    labels = jax.random.randint(k_labels, (N,), 1, num_classes + 1, dtype=jnp.int32)

    transform = SegmentationMaskTensorWithBackground(num_classes)
    out_image, out_target = transform(image, {"masks": masks, "labels": labels})

    seg = jax.block_until_ready(out_target["segmentation_mask"])
    assert seg.shape == (num_classes + 1, H, W)
    assert seg.dtype == jnp.float32
    assert "masks" not in out_target

    ref = _reference(masks, labels, num_classes, H, W)
    assert jnp.allclose(seg, ref, atol=1e-5), "mismatch vs reference"

    print("KERNEL_OK")
</pallas_src>

<mosaic_0001>
module attributes {stable_mosaic.version = 11 : i64} {
  func.func @_seg_mask_kernel(%arg0: i32, %arg1: memref<5x8xbf16, #tpu.memory_space<vmem>>, %arg2: memref<8x128xf32, #tpu.memory_space<vmem>>, %arg3: memref<5x128xf32, #tpu.memory_space<vmem>>) attributes {dimension_semantics = [#tpu.dimension_semantics<parallel>], iteration_bounds = array<i64: 2>, scalar_prefetch = 0 : i64, scratch_operands = 0 : i64, tpu.core_type = #tpu.core_type<tc>, window_params = [{pipeline_mode = #tpu.pipeline_mode<synchronous>, transform_indices = @transform_0, window_bounds = array<i64: 5, 8>}, {transform_indices = @transform_1, window_bounds = array<i64: 8, 128>}, {transform_indices = @transform_2, window_bounds = array<i64: 5, 128>}]} {
    %c0 = arith.constant 0 : index
    %c0_0 = arith.constant 0 : index
    %0 = vector.load %arg2[%c0, %c0_0] : memref<8x128xf32, #tpu.memory_space<vmem>>, vector<8x128xf32>
    %1 = arith.truncf %0 : vector<8x128xf32> to vector<8x128xbf16>
    %c0_1 = arith.constant 0 : index
    %c0_2 = arith.constant 0 : index
    %2 = vector.load %arg1[%c0_1, %c0_2] : memref<5x8xbf16, #tpu.memory_space<vmem>>, vector<5x8xbf16>
    %cst = arith.constant dense<0.000000e+00> : vector<5x128xf32>
    %3 = tpu.matmul %2, %1, %cst {dimension_numbers = #tpu.dot_dimension_numbers<[1], [0], [0], [1], [0, 0, 1, 1], [], []>} : vector<5x8xbf16>, vector<8x128xbf16>, vector<5x128xf32> -> vector<5x128xf32>
    %4 = vector.extract_strided_slice %3 {offsets = [0, 0], sizes = [1, 128], strides = [1, 1]} : vector<5x128xf32> to vector<1x128xf32>
    %cst_3 = arith.constant 1.000000e+00 : f32
    %5 = vector.broadcast %cst_3 : f32 to vector<1x128xf32>
    %6 = arith.minimumf %4, %5 : vector<1x128xf32>
    %cst_4 = arith.constant 1.000000e+00 : f32
    %7 = vector.broadcast %cst_4 : f32 to vector<1x128xf32>
    %8 = arith.subf %7, %6 : vector<1x128xf32>
    %9 = tpu.iota {dimensions = array<i32: 0>} : vector<5x128xi32>
    %c0_i32 = arith.constant 0 : i32
    %10 = vector.broadcast %c0_i32 : i32 to vector<5x128xi32>
    %11 = arith.cmpi eq, %9, %10 : vector<5x128xi32>
    %12 = vector.shape_cast %8 : vector<1x128xf32> to vector<1x128xf32>
    %13 = vector.broadcast %12 : vector<1x128xf32> to vector<5x128xf32>
    %14 = arith.select %11, %13, %3 : vector<5x128xi1>, vector<5x128xf32>
    %c0_5 = arith.constant 0 : index
    %c0_6 = arith.constant 0 : index
    %15 = vector.load %arg3[%c0_5, %c0_6] : memref<5x128xf32, #tpu.memory_space<vmem>>, vector<5x128xf32>
    tpu.vector_store %arg3[%c0_5, %c0_6], %14 {strides = array<i32>} : memref<5x128xf32, #tpu.memory_space<vmem>>, vector<5x128xf32>,
    return
  }
  func.func @transform_0(%arg0: i32) -> (i32, i32) {
    %c0_i32 = arith.constant 0 : i32
    %c0_i32_0 = arith.constant 0 : i32
    %c0_i32_1 = arith.constant 0 : i32
    return %c0_i32, %c0_i32_0 : i32, i32
  }
  func.func @transform_1(%arg0: i32) -> (i32, i32) {
    %c0_i32 = arith.constant 0 : i32
    %c0_i32_0 = arith.constant 0 : i32
    return %c0_i32, %arg0 : i32, i32
  }
  func.func @transform_2(%arg0: i32) -> (i32, i32) {
    %c0_i32 = arith.constant 0 : i32
    %c0_i32_0 = arith.constant 0 : i32
    return %c0_i32, %arg0 : i32, i32
  }
}

</mosaic_0001>

<llo_original>
// kernel: tpu_custom_call.1
$region0: #{tpu_custom_call.1}
  #allocation0 [shape = 'u32[]', space=smem, size = 0x4, offset = 0x4, fixed_abs, tag = 'smem constant byte address 0x4 - core index']
  #allocation1 [shape = 'u32[144,128]{1,0:T(1,128)}', space=vmem, size = 0x12000, scoped, tag = 'internal scratch']
  %s0 = inlined_call_operand.hbm [shape: bf16[5,8], index: 0, kind: input, shape index: {}]
  %s1 = inlined_call_operand.hbm [shape: f32[8,256], index: 1, kind: input, shape index: {}]
  %s2 = inlined_call_operand.hbm [shape: f32[5,256], index: 2, kind: output, shape index: {}]
  %s3 = sld [smem:[#allocation0]]
  $region49: #{tpu_custom_call.1} parent=0
    _
  %s5 = ssub.s32 1, %s3
  %s6 = scalar_select 0, %s5, %s3
  $region1: #{tpu_custom_call.1} parent=0
    #allocation2 [shape = 'u8[2048]{0}', space=vmem, size = 0x800, scoped, tag = 'input window, operand 0, single buffered']
    #allocation3 [shape = 's32[2]{0}', space=sflag, size = 0x8, scoped, tag = 'scoped memory for tpu_custom_call.1']
    #allocation4 [shape = 's32[2]{0}', space=sflag, size = 0x8, scoped, tag = 'scoped memory for tpu_custom_call.1']
    #allocation5 [shape = 'u8[8192]{0}', space=vmem, size = 0x2000, scoped, tag = 'input window, operand 1']
    #allocation6 [shape = 's32[2]{0}', space=sflag, size = 0x8, scoped, tag = 'scoped memory for tpu_custom_call.1']
    #allocation7 [shape = 'u8[8192]{0}', space=vmem, size = 0x2000, scoped, tag = 'output window, operand 0']
    %7 = vsyncpa [#allocation3], 0
    %8 = vsyncpa [#allocation6], 0
    %s9 = scalar_lea.sflag [#allocation6], 1
    %10 = vsyncpa %s9, 0
    %11 = vsyncpa [#allocation4], 0
    %s12 = scalar_lea.sflag [#allocation4], 1
    %13 = vsyncpa %s12, 0
    loop: start=0, step=1, limit=4
    $region2: #{tpu_custom_call.1} parent=1 // loop_pre_header
      _
    $region3: #{tpu_custom_call.1} parent=1 // loop_header
      %s15 = sphi 0, %s19
      %p16 = scmp.ge.s32.totalorder %s15, 4
      %s23 = sphi 0, %s23
      %s25 = sphi 0, %s23
      %s26 = sphi 0, %s25
      %s40 = sphi 0, %s26
      %s46 = sphi 0, %s48
      %s49 = sphi 0, %s46
      %s50 = sphi 0, %s49
      %s66 = sphi 0, %s50
      %s72 = sphi 0, %s74
      %s75 = sphi 0, %s72
      %s76 = sphi 0, %s75
      %s92 = sphi 0, %s76
    $region4: #{tpu_custom_call.1} parent=1 // loop_header_branch
      %18 = sbr.rel (%p16) target = $region8
    $region5: #{tpu_custom_call.1} parent=1 // loop_body
      %s20 = ssub.s32 %s15, 1
      %s21 = ssub.s32 %s15, 2
      %s22 = sadd.s32 %s15, 1
      %s24 = sadd.s32 %s23, 1
      %p27 = scmp.eq.s32.totalorder %s15, 1
      %p28 = scmp.ne.s32.totalorder %s23, %s25
      %p29 = scmp.eq.s32.totalorder %s15, 0
      %p30 = por %p28, %p29
      %p31 = scmp.ne.s32.totalorder %s23, %s25
      %p32 = scmp.eq.s32.totalorder %s20, 1
      %p33 = por %p31, %p32
      %p34 = scmp.ne.s32.totalorder %s25, %s26
      %p35 = scmp.eq.s32.totalorder %s20, 0
      %p36 = por %p34, %p35
      %p37 = scmp.ne.s32.totalorder %s25, %s26
      %p38 = scmp.eq.s32.totalorder %s21, 1
      %p39 = por %p37, %p38
      %p41 = scmp.ne.s32.totalorder %s26, %s40
      %p42 = scmp.eq.s32.totalorder %s21, 0
      %p43 = por %p41, %p42
      %s44 = ssub.s32 %s15, %s22
      %p45 = scmp.eq.s32.totalorder %s44, 0
      %s47 = sadd.s32 %s46, 1
      %s48 = scalar_select %p45, %s46, %s47
      %p51 = pneg %p45
      %p52 = scmp.eq.s32.totalorder %s15, 1
      %p53 = por %p51, %p52
      %p54 = scmp.ne.s32.totalorder %s46, %s49
      %p55 = scmp.eq.s32.totalorder %s15, 0
      %p56 = por %p54, %p55
      %p57 = scmp.ne.s32.totalorder %s46, %s49
      %p58 = scmp.eq.s32.totalorder %s20, 1
      %p59 = por %p57, %p58
      %p60 = scmp.ne.s32.totalorder %s49, %s50
      %p61 = scmp.eq.s32.totalorder %s20, 0
      %p62 = por %p60, %p61
      %p63 = scmp.ne.s32.totalorder %s49, %s50
      %p64 = scmp.eq.s32.totalorder %s21, 1
      %p65 = por %p63, %p64
      %p67 = scmp.ne.s32.totalorder %s50, %s66
      %p68 = scmp.eq.s32.totalorder %s21, 0
      %p69 = por %p67, %p68
      %s70 = ssub.s32 %s15, %s22
      %p71 = scmp.eq.s32.totalorder %s70, 0
      %s73 = sadd.s32 %s72, 1
      %s74 = scalar_select %p71, %s72, %s73
      %p77 = pneg %p71
      %p78 = scmp.eq.s32.totalorder %s15, 1
      %p79 = por %p77, %p78
      %p80 = scmp.ne.s32.totalorder %s72, %s75
      %p81 = scmp.eq.s32.totalorder %s15, 0
      %p82 = por %p80, %p81
      %p83 = scmp.ne.s32.totalorder %s72, %s75
      %p84 = scmp.eq.s32.totalorder %s20, 1
      %p85 = por %p83, %p84
      %p86 = scmp.ne.s32.totalorder %s75, %s76
      %p87 = scmp.eq.s32.totalorder %s20, 0
      %p88 = por %p86, %p87
      %p89 = scmp.ne.s32.totalorder %s75, %s76
      %p90 = scmp.eq.s32.totalorder %s21, 1
      %p91 = por %p89, %p90
      %p93 = scmp.ne.s32.totalorder %s76, %s92
      %p94 = scmp.eq.s32.totalorder %s21, 0
      %p95 = por %p93, %p94
      %p96 = scmp.le.s32.totalorder 1, %s15
      %p97 = scmp.lt.s32.totalorder %s15, 3
      %p98 = pnand %p96, %p97
      %p99 = pneg %p98
      // Predicated region
      $region9: #{tpu_custom_call.1} parent=5 // pred_check
        _
      $region10: #{tpu_custom_call.1} parent=5 // pred_check_branch
        %101 = sbr.rel (%p98) target = $region12
      $region11: #{tpu_custom_call.1} parent=5 // pred_region
        %s102 = ssub.s32 %s15, 1
        // Predicated region
        $region13: #{tpu_custom_call.1} parent=11 // pred_check
          %p103 = pneg %p36
        $region14: #{tpu_custom_call.1} parent=11 // pred_check_branch
          %105 = sbr.rel (%p103) target = $region16
        $region15: #{tpu_custom_call.1} parent=11 // pred_region
          %s107 = ssub.s32 64, 64
          %108 = vsyncadd [#allocation3], %s107
          %s110 = sshll.u32 [#allocation2], 4
          %s111 = int_to_ptr.vmem [resolvable:$true] %s110
          %113 = dma.hbm_to_vmem [thread:$0]  %s0, 64, %s111, [#allocation3]
        $region16: #{tpu_custom_call.1} parent=11 // pred_fallthru
          _
      $region12: #{tpu_custom_call.1} parent=5 // pred_fallthru
        _
      %p114 = scmp.lt.s32.totalorder %s15, 2
      // Predicated region
      $region17: #{tpu_custom_call.1} parent=5 // pred_check
        %p115 = pneg %p114
      $region18: #{tpu_custom_call.1} parent=5 // pred_check_branch
        %117 = sbr.rel (%p115) target = $region20
      $region19: #{tpu_custom_call.1} parent=5 // pred_region
        // Predicated region
        $region21: #{tpu_custom_call.1} parent=19 // pred_check
          %p118 = pneg %p56
        $region22: #{tpu_custom_call.1} parent=19 // pred_check_branch
          %120 = sbr.rel (%p118) target = $region24
        $region23: #{tpu_custom_call.1} parent=19 // pred_region
          %s121 = sand.u32 %s46, 1
          %s122 = scalar_lea.sflag [#allocation6], %s121
          %s123 = sand.u32 %s46, 1
          %s124 = smul.addr %s123, 8
          %s125 = scalar_lea.vmem [#allocation5], %s124
          %s127 = ssub.s32 128, 128
          %128 = vsyncadd %s122, %s127
          %s129 = smul.addr %s15, 128
          %s130 = scalar_lea.hbm %s1, %s129
          %s132 = sshll.u32 %s125, 4
          %s133 = int_to_ptr.vmem [resolvable:$true] %s132
          %135 = dma.hbm_to_vmem [thread:$0]  %s130, 128, %s133, %s122
        $region24: #{tpu_custom_call.1} parent=19 // pred_fallthru
          _
      $region20: #{tpu_custom_call.1} parent=5 // pred_fallthru
        _
      %p136 = scmp.le.s32.totalorder 1, %s15
      %p137 = scmp.lt.s32.totalorder %s15, 3
      %p138 = pnand %p136, %p137
      %p139 = pneg %p138
      // Predicated region
      $region25: #{tpu_custom_call.1} parent=5 // pred_check
        _
      $region26: #{tpu_custom_call.1} parent=5 // pred_check_branch
        %141 = sbr.rel (%p138) target = $region28
      $region27: #{tpu_custom_call.1} parent=5 // pred_region
        %s142 = ssub.s32 %s15, 1
        // Predicated region
        $region29: #{tpu_custom_call.1} parent=27 // pred_check
          %p143 = pneg %p36
        $region30: #{tpu_custom_call.1} parent=27 // pred_check_branch
          %145 = sbr.rel (%p143) target = $region32
        $region31: #{tpu_custom_call.1} parent=27 // pred_region
          %146 = dma.done [#allocation3], 64
        $region32: #{tpu_custom_call.1} parent=27 // pred_fallthru
          _
        %s147 = sand.u32 %s49, 1
        %s148 = scalar_lea.sflag [#allocation6], %s147
        %s149 = sand.u32 %s49, 1
        %s150 = smul.addr %s149, 8
        %s151 = scalar_lea.vmem [#allocation5], %s150
        // Predicated region
        $region33: #{tpu_custom_call.1} parent=27 // pred_check
          %p152 = pneg %p62
        $region34: #{tpu_custom_call.1} parent=27 // pred_check_branch
          %154 = sbr.rel (%p152) target = $region36
        $region35: #{tpu_custom_call.1} parent=27 // pred_region
          %155 = dma.done %s148, 128
        $region36: #{tpu_custom_call.1} parent=27 // pred_fallthru
          _
        %p156 = pneg %p36
        %p157 = pneg %p33
        %s158 = sand.u32 %s49, 1
        %s159 = scalar_lea.sflag [#allocation6], %s158
        %s160 = sand.u32 %s49, 1
        %s161 = smul.addr %s160, 8
        %s162 = scalar_lea.vmem [#allocation5], %s161
        %p163 = pneg %p62
        %p164 = pneg %p59
        %p165 = pneg %p88
        %p166 = pneg %p85
        %s167 = sand.u32 %s75, 1
        %s168 = scalar_lea.sflag [#allocation4], %s167
        %s169 = sand.u32 %s75, 1
        %s170 = smul.addr %s169, 8
        %s171 = scalar_lea.vmem [#allocation7], %s170
        %v173 = vld [vmem:[%s151] sm:$0xff]
        %v174 = vpack.c.bf16 %v173, %v173
        %v175 = vld [vmem:[#allocation2] sm:$0x7]
        %vm176 = vcmask 64512
        %v178 = vsel %vm176, %v175, 0
        %vm180 = vcmask 1043456
        %v182 = vsel %vm180, %v174, 0
        %184 = vmatprep.subr.bf16.mxu0 0
        %185 = vmatpush1.bf16.msra.mxu0 %v182
        %186 = vmatprep.subr.bf16.mxu0 0
        %187 = vmatpush1.bf16.msra.mxu0 0
        %188 = vmatprep.subr.bf16.mxu0 0
        %189 = vmatpush1.bf16.msra.mxu0 0
        %190 = vmatprep.subr.bf16.mxu0 0
        %191 = vmatpush1.bf16.msra.mxu0 0
        %192 = vmatprep.subr.bf16.mxu0 0
        %193 = vmatpush1.bf16.msra.mxu0 0
        %194 = vmatprep.subr.bf16.mxu0 0
        %195 = vmatpush1.bf16.msra.mxu0 0
        %196 = vmatprep.subr.bf16.mxu0 0
        %197 = vmatpush1.bf16.msra.mxu0 0
        %198 = vmatprep.subr.bf16.mxu0 0
        %199 = vmatpush1.bf16.msra.mxu0 0
        %200 = vmatprep.subr.bf16.mxu0 0
        %201 = vmatpush1.bf16.msra.mxu0 0
        %202 = vmatprep.subr.bf16.mxu0 0
        %203 = vmatpush1.bf16.msra.mxu0 0
        %204 = vmatprep.subr.bf16.mxu0 0
        %205 = vmatpush1.bf16.msra.mxu0 0
        %206 = vmatprep.subr.bf16.mxu0 0
        %207 = vmatpush1.bf16.msra.mxu0 0
        %208 = vmatprep.subr.bf16.mxu0 0
        %209 = vmatpush1.bf16.msra.mxu0 0
        %210 = vmatprep.subr.bf16.mxu0 0
        %211 = vmatpush1.bf16.msra.mxu0 0
        %212 = vmatprep.subr.bf16.mxu0 0
        %213 = vmatpush1.bf16.msra.mxu0 0
        %214 = vmatprep.subr.bf16.mxu0 0
        %215 = vmatpush1.bf16.msra.mxu0 0
        %216 = vmatprep.mubr.bf16.mxu0 0
        %217 = vmatmul.mubr.bf16.gmra.mrb[0].mxu0 %v178
        %v218 = vpop.f32.mrb[0].mxu0
        %v219 = vadd.f32 0.0, %v218
        %v220 = vpop.f32.mrb[0].mxu0
        %v221 = vpop.f32.mrb[0].mxu0
        %v222 = vpop.f32.mrb[0].mxu0
        %223 = vdwg.mxu0
        %v224 = vmin.f32 %v219, 1.0
        %v225 = vsub.f32 1.0, %v224
        %v226 = vlaneseq
        %v227 = vshrl.u32 %v226, 7
        %vm228 = vcmp.eq.s32.totalorder %v227, 0
        %v229 = vlaneseq
        %v230 = vshrl.u32 %v229, 7
        %v231 = vsub.s32 0, %v230
        %v232 = vrot.slane %v225, %v231
        %v233 = vsel %vm228, %v232, %v219
        %234 = vst [vmem:[%s171] sm:$0x1f] %v233
        %s235 = sand.u32 %s75, 1
        %s236 = scalar_lea.sflag [#allocation4], %s235
        %s237 = sand.u32 %s75, 1
        %s238 = smul.addr %s237, 8
        %s239 = scalar_lea.vmem [#allocation7], %s238
        // Predicated region
        $region37: #{tpu_custom_call.1} parent=27 // pred_check
          %p240 = pneg %p85
        $region38: #{tpu_custom_call.1} parent=27 // pred_check_branch
          %242 = sbr.rel (%p240) target = $region40
        $region39: #{tpu_custom_call.1} parent=27 // pred_region
          %s244 = ssub.s32 128, 128
          %245 = vsyncadd %s236, %s244
          %s246 = smul.addr %s20, 128
          %s247 = scalar_lea.hbm %s2, %s246
          %s249 = sshll.u32 %s239, 4
          %s250 = int_to_ptr.vmem [resolvable:$true] %s249
          %252 = dma.vmem_to_hbm [thread:$0]  %s250, 128, %s247, %s236
        $region40: #{tpu_custom_call.1} parent=27 // pred_fallthru
          _
      $region28: #{tpu_custom_call.1} parent=5 // pred_fallthru
        _
      %p253 = scmp.le.s32.totalorder 2, %s15
      // Predicated region
      $region41: #{tpu_custom_call.1} parent=5 // pred_check
        %p254 = pneg %p253
      $region42: #{tpu_custom_call.1} parent=5 // pred_check_branch
        %256 = sbr.rel (%p254) target = $region44
      $region43: #{tpu_custom_call.1} parent=5 // pred_region
        %s257 = ssub.s32 %s15, 2
        // Predicated region
        $region45: #{tpu_custom_call.1} parent=43 // pred_check
          %p258 = pneg %p91
        $region46: #{tpu_custom_call.1} parent=43 // pred_check_branch
          %260 = sbr.rel (%p258) target = $region48
        $region47: #{tpu_custom_call.1} parent=43 // pred_region
          %s261 = sand.u32 %s76, 1
          %s262 = scalar_lea.sflag [#allocation4], %s261
          %s263 = sand.u32 %s76, 1
          %s264 = smul.addr %s263, 8
          %s265 = scalar_lea.vmem [#allocation7], %s264
          %266 = dma.done %s262, 128
        $region48: #{tpu_custom_call.1} parent=43 // pred_fallthru
          _
      $region44: #{tpu_custom_call.1} parent=5 // pred_fallthru
        _
    $region6: #{tpu_custom_call.1} parent=1 // loop_footer
      %s19 = sadd.s32 1, %s15
    $region7: #{tpu_custom_call.1} parent=1 // loop_footer_branch
      %14 = sbr.rel target = $region3
    $region8: #{tpu_custom_call.1} parent=1 // loop_exit
      _
    %267 = vsyncpa [#allocation3], 1
    %s268 = scalar_lea.sflag [#allocation3], 1
    %269 = vsyncpa %s268, 1
    %270 = vsyncpa [#allocation6], 1
    %s271 = scalar_lea.sflag [#allocation6], 1
    %272 = vsyncpa %s271, 1
    %273 = vsyncpa [#allocation4], 1
    %s274 = scalar_lea.sflag [#allocation4], 1
    %275 = vsyncpa %s274, 1

</llo_original>
